<compile_context>
chip_gen: v6e
topology: v6e:2x2x1
jax: 0.10.0
libtpu: 0.0.40
codegen_flags: <defaults>
</compile_context>

<pallas_src>
import functools

import numpy as np
import jax
import jax.numpy as jnp
from jax.experimental import pallas as pl
from jax.experimental.pallas import tpu as pltpu


# ----------------------------- Pallas kernel --------------------------------

def _hsic_kernel(x_ref, y_ref, out_ref, *, sigma, mxu_bf16):
    """Fused RBF-kernel HSIC: Gram matrices, RBF, arithmetic centering, trace."""
    x = x_ref[...].astype(jnp.float32)
    y = y_ref[...].astype(jnp.float32)
    B = x.shape[0]
    inv_two_sigma2 = 1.0 / (2.0 * float(sigma) * float(sigma))

    def rbf(a):
        # Gram on the MXU (contract feature axis, no explicit transpose).
        a_mx = a.astype(jnp.bfloat16) if mxu_bf16 else a
        G = jax.lax.dot_general(a_mx, a_mx, (((1,), (1,)), ((), ())),
                                preferred_element_type=jnp.float32)
        # Squared norms straight from the input (single lane reduction, f32 VPU).
        n = jnp.sum(a * a, axis=1, keepdims=True)              # [B, 1]
        d = jnp.maximum(n + jnp.transpose(n) - 2.0 * G, 0.0)    # clamp fp residue
        return jnp.exp(-d * inv_two_sigma2)                     # EUP exp

    Kx = rbf(x)
    Ky = rbf(y)

    # Arithmetic double-centering of Kx only:
    #   (H Kx H)_{ij} = Kx_{ij} - rowmean_i - colmean_j + totalmean
    # and trace((H Kx H)(H Ky H)) = sum((H Kx H) * Ky)  since H^2 = H and
    # Ky is symmetric.  No B×B×B matmuls, no H materialization.
    row_mean = jnp.mean(Kx, axis=1, keepdims=True)              # [B, 1]
    col_mean = jnp.mean(Kx, axis=0, keepdims=True)              # [1, B]
    tot_mean = jnp.mean(Kx)
    Kxc = Kx - row_mean - col_mean + tot_mean

    hsic = jnp.sum(Kxc * Ky) / float((B - 1) ** 2)
    out_ref[0, 0] = hsic                                         # SMEM scalar


def hsic_pallas(x, y, sigma=1.0, mxu_bf16=False):
    """HSIC(x, y) -> scalar, matching the PyTorch module's forward()."""
    # TODO(synk): if B ever scales to the thousands, tile the Gram/centering
    # over a B grid (blocked Gram + two-pass centering) so the [B,B] buffers
    # fit v7x's 64 MiB VMEM; at small batch sizes a single block is optimal.
    kern = functools.partial(_hsic_kernel, sigma=sigma, mxu_bf16=mxu_bf16)
    out = pl.pallas_call(
        kern,
        out_shape=jax.ShapeDtypeStruct((1, 1), jnp.float32),
        in_specs=[pl.BlockSpec(memory_space=pltpu.MemorySpace.VMEM)] * 2,
        out_specs=pl.BlockSpec(memory_space=pltpu.MemorySpace.SMEM),
    )(x.astype(jnp.float32), y.astype(jnp.float32))
    return out[0, 0]


# ------------------------- pure-JAX reference (spec) -------------------------

def hsic_reference(x, y, sigma=1.0):
    """Literal translation of the PyTorch HSIC module (for correctness check)."""
    x = x.astype(jnp.float32)
    y = y.astype(jnp.float32)
    B = x.shape[0]

    def compute_kernel(a):
        n = jnp.sum(a * a, axis=1).reshape(-1, 1)
        dist = n + n.reshape(1, -1) - 2.0 * (a @ a.T)
        return jnp.exp(-dist / (2.0 * sigma ** 2))

    Kx = compute_kernel(x)
    Ky = compute_kernel(y)
    H = jnp.eye(B, dtype=jnp.float32) - 1.0 / B
    Kxc = H @ Kx @ H
    Kyc = H @ Ky @ H
    return jnp.trace(Kxc @ Kyc) / float((B - 1) ** 2)


# ----------------------------------- main ------------------------------------

if __name__ == "__main__":
    key = jax.random.PRNGKey(0)
    kx, ky = jax.random.split(key)

    batch = 8
    feat = 32
    x = jax.random.normal(kx, (batch, feat), jnp.float32)
    y = jax.random.normal(ky, (batch, feat), jnp.float32)

    # jit the wrapper so the single pallas_call dispatches asynchronously
    # (no host syncs between trace and result readout).
    hsic_fn = jax.jit(functools.partial(hsic_pallas, sigma=1.0))
    hsic_val = hsic_fn(x, y)
    jax.block_until_ready(hsic_val)

    ref_val = hsic_reference(x, y, sigma=1.0)
    np.testing.assert_allclose(np.asarray(hsic_val), np.asarray(ref_val),
                               rtol=1e-4, atol=1e-6)

    print("KERNEL_OK")
</pallas_src>

<mosaic_0001>
module attributes {stable_mosaic.version = 11 : i64} {
  func.func @_hsic_kernel(%arg0: memref<8x32xf32, #tpu.memory_space<vmem>>, %arg1: memref<8x32xf32, #tpu.memory_space<vmem>>, %arg2: memref<1x1xf32, #tpu.memory_space<smem>>) attributes {dimension_semantics = [], scalar_prefetch = 0 : i64, scratch_operands = 0 : i64, tpu.core_type = #tpu.core_type<tc>} {
    %c0 = arith.constant 0 : index
    %c0_0 = arith.constant 0 : index
    %0 = vector.load %arg0[%c0, %c0_0] : memref<8x32xf32, #tpu.memory_space<vmem>>, vector<8x32xf32>
    %c0_1 = arith.constant 0 : index
    %c0_2 = arith.constant 0 : index
    %1 = vector.load %arg1[%c0_1, %c0_2] : memref<8x32xf32, #tpu.memory_space<vmem>>, vector<8x32xf32>
    %cst = arith.constant dense<0.000000e+00> : vector<8x8xf32>
    %2 = tpu.matmul %0, %0, %cst {dimension_numbers = #tpu.dot_dimension_numbers<[1], [1], [0], [0], [0, 0, 1, 0], [], []>} : vector<8x32xf32>, vector<8x32xf32>, vector<8x8xf32> -> vector<8x8xf32>
    %3 = arith.mulf %0, %0 : vector<8x32xf32>
    %cst_3 = arith.constant dense<0.000000e+00> : vector<8xf32>
    %4 = vector.multi_reduction <add>, %3, %cst_3 [1] : vector<8x32xf32> to vector<8xf32>
    %5 = vector.shape_cast %4 : vector<8xf32> to vector<8x1xf32>
    %6 = tpu.transpose %5, [1, 0] : vector<8x1xf32> -> vector<1x8xf32>
    %7 = vector.broadcast %5 : vector<8x1xf32> to vector<8x8xf32>
    %8 = vector.broadcast %6 : vector<1x8xf32> to vector<8x8xf32>
    %9 = arith.addf %7, %8 : vector<8x8xf32>
    %cst_4 = arith.constant 2.000000e+00 : f32
    %10 = vector.broadcast %cst_4 : f32 to vector<8x8xf32>
    %11 = arith.mulf %10, %2 : vector<8x8xf32>
    %12 = arith.subf %9, %11 : vector<8x8xf32>
    %cst_5 = arith.constant 0.000000e+00 : f32
    %13 = vector.broadcast %cst_5 : f32 to vector<8x8xf32>
    %14 = arith.maximumf %12, %13 : vector<8x8xf32>
    %cst_6 = arith.constant 0.000000e+00 : f32
    %15 = vector.broadcast %cst_6 : f32 to vector<8x8xf32>
    %16 = arith.subf %15, %14 : vector<8x8xf32>
    %cst_7 = arith.constant 5.000000e-01 : f32
    %17 = vector.broadcast %cst_7 : f32 to vector<8x8xf32>
    %18 = arith.mulf %16, %17 : vector<8x8xf32>
    %19 = math.exp %18 : vector<8x8xf32>
    %cst_8 = arith.constant dense<0.000000e+00> : vector<8x8xf32>
    %20 = tpu.matmul %1, %1, %cst_8 {dimension_numbers = #tpu.dot_dimension_numbers<[1], [1], [0], [0], [0, 0, 1, 0], [], []>} : vector<8x32xf32>, vector<8x32xf32>, vector<8x8xf32> -> vector<8x8xf32>
    %21 = arith.mulf %1, %1 : vector<8x32xf32>
    %cst_9 = arith.constant dense<0.000000e+00> : vector<8xf32>
    %22 = vector.multi_reduction <add>, %21, %cst_9 [1] : vector<8x32xf32> to vector<8xf32>
    %23 = vector.shape_cast %22 : vector<8xf32> to vector<8x1xf32>
    %24 = tpu.transpose %23, [1, 0] : vector<8x1xf32> -> vector<1x8xf32>
    %25 = vector.broadcast %23 : vector<8x1xf32> to vector<8x8xf32>
    %26 = vector.broadcast %24 : vector<1x8xf32> to vector<8x8xf32>
    %27 = arith.addf %25, %26 : vector<8x8xf32>
    %cst_10 = arith.constant 2.000000e+00 : f32
    %28 = vector.broadcast %cst_10 : f32 to vector<8x8xf32>
    %29 = arith.mulf %28, %20 : vector<8x8xf32>
    %30 = arith.subf %27, %29 : vector<8x8xf32>
    %cst_11 = arith.constant 0.000000e+00 : f32
    %31 = vector.broadcast %cst_11 : f32 to vector<8x8xf32>
    %32 = arith.maximumf %30, %31 : vector<8x8xf32>
    %cst_12 = arith.constant 0.000000e+00 : f32
    %33 = vector.broadcast %cst_12 : f32 to vector<8x8xf32>
    %34 = arith.subf %33, %32 : vector<8x8xf32>
    %cst_13 = arith.constant 5.000000e-01 : f32
    %35 = vector.broadcast %cst_13 : f32 to vector<8x8xf32>
    %36 = arith.mulf %34, %35 : vector<8x8xf32>
    %37 = math.exp %36 : vector<8x8xf32>
    %cst_14 = arith.constant dense<0.000000e+00> : vector<8xf32>
    %38 = vector.multi_reduction <add>, %19, %cst_14 [1] : vector<8x8xf32> to vector<8xf32>
    %39 = vector.shape_cast %38 : vector<8xf32> to vector<8x1xf32>
    %cst_15 = arith.constant 8.000000e+00 : f32
    %40 = vector.broadcast %cst_15 : f32 to vector<8x1xf32>
    %41 = arith.divf %39, %40 : vector<8x1xf32>
    %cst_16 = arith.constant dense<0.000000e+00> : vector<8xf32>
    %42 = vector.multi_reduction <add>, %19, %cst_16 [0] : vector<8x8xf32> to vector<8xf32>
    %43 = vector.shape_cast %42 : vector<8xf32> to vector<1x8xf32>
    %cst_17 = arith.constant 8.000000e+00 : f32
    %44 = vector.broadcast %cst_17 : f32 to vector<1x8xf32>
    %45 = arith.divf %43, %44 : vector<1x8xf32>
    %46 = vector.shape_cast %19 : vector<8x8xf32> to vector<1x8x8xf32>
    %cst_18 = arith.constant dense<0.000000e+00> : vector<1xf32>
    %47 = vector.multi_reduction <add>, %46, %cst_18 [1, 2] : vector<1x8x8xf32> to vector<1xf32>
    %48 = vector.shape_cast %47 : vector<1xf32> to vector<1x1x1xf32>
    %49 = vector.extract %48[0, 0, 0] : f32 from vector<1x1x1xf32>
    %cst_19 = arith.constant 6.400000e+01 : f32
    %50 = arith.divf %49, %cst_19 : f32
    %51 = vector.broadcast %41 : vector<8x1xf32> to vector<8x8xf32>
    %52 = arith.subf %19, %51 : vector<8x8xf32>
    %53 = vector.broadcast %45 : vector<1x8xf32> to vector<8x8xf32>
    %54 = arith.subf %52, %53 : vector<8x8xf32>
    %55 = vector.broadcast %50 : f32 to vector<8x8xf32>
    %56 = arith.addf %54, %55 : vector<8x8xf32>
    %57 = arith.mulf %56, %37 : vector<8x8xf32>
    %58 = vector.shape_cast %57 : vector<8x8xf32> to vector<1x8x8xf32>
    %cst_20 = arith.constant dense<0.000000e+00> : vector<1xf32>
    %59 = vector.multi_reduction <add>, %58, %cst_20 [1, 2] : vector<1x8x8xf32> to vector<1xf32>
    %60 = vector.shape_cast %59 : vector<1xf32> to vector<1x1x1xf32>
    %61 = vector.extract %60[0, 0, 0] : f32 from vector<1x1x1xf32>
    %cst_21 = arith.constant 4.900000e+01 : f32
    %62 = arith.divf %61, %cst_21 : f32
    %c0_22 = arith.constant 0 : index
    %c0_23 = arith.constant 0 : index
    %63 = memref.load %arg2[%c0_22, %c0_23] : memref<1x1xf32, #tpu.memory_space<smem>>
    memref.store %62, %arg2[%c0_22, %c0_23] : memref<1x1xf32, #tpu.memory_space<smem>>
    return
  }
}

</mosaic_0001>

<llo_original>
// kernel: hsic_pallas.1
$region0: #{hsic_pallas.1}
  #allocation0 [shape = 'u32[]', space=smem, size = 0x4, offset = 0x4, fixed_abs, tag = 'smem constant byte address 0x4 - core index']
  #allocation1 [shape = 'u32[144,128]{1,0:T(1,128)}', space=vmem, size = 0x12000, scoped, tag = 'internal scratch']
  %s0 = inlined_call_operand.hbm [shape: f32[8,32], index: 0, kind: input, shape index: {}]
  %s1 = inlined_call_operand.hbm [shape: f32[8,32], index: 1, kind: input, shape index: {}]
  %s2 = inlined_call_operand.hbm [shape: f32[1,1], index: 2, kind: output, shape index: {}]
  %s3 = sld [smem:[#allocation0]]
  $region26: #{hsic_pallas.1} parent=0
    _
  %s5 = ssub.s32 1, %s3
  %s6 = scalar_select 0, %s5, %s3
  $region1: #{hsic_pallas.1} parent=0
    #allocation2 [shape = 'u8[4096]{0}', space=vmem, size = 0x1000, scoped, tag = 'input window, operand 0, single buffered']
    #allocation3 [shape = 's32[1]{0}', space=sflag, size = 0x4, scoped, tag = 'scoped memory for hsic_pallas.1']
    #allocation4 [shape = 's32[1]{0}', space=sflag, size = 0x4, scoped, tag = 'scoped memory for hsic_pallas.1']
    #allocation5 [shape = 'u8[4096]{0}', space=vmem, size = 0x1000, scoped, tag = 'input window, operand 1, single buffered']
    #allocation6 [shape = 's32[1]{0}', space=sflag, size = 0x4, scoped, tag = 'scoped memory for hsic_pallas.1']
    #allocation7 [shape = 'u8[512]{0}', space=smem, size = 0x200, scoped, tag = 'output window, operand 0, single buffered']
    %7 = vsyncpa [#allocation3], 0
    %8 = vsyncpa [#allocation6], 0
    %9 = vsyncpa [#allocation4], 0
    // Predicated region
    $region2: #{hsic_pallas.1} parent=1 // pred_check
      _
    $region3: #{hsic_pallas.1} parent=1 // pred_check_branch
      %11 = sbr.rel (0) target = $region5
    $region4: #{hsic_pallas.1} parent=1 // pred_region
      %s13 = ssub.s32 128, 128
      %14 = vsyncadd [#allocation3], %s13
      %s16 = sshll.u32 [#allocation2], 4
      %s17 = int_to_ptr.vmem [resolvable:$true] %s16
      %19 = dma.hbm_to_vmem [thread:$0]  %s0, 128, %s17, [#allocation3]
    $region5: #{hsic_pallas.1} parent=1 // pred_fallthru
      _
    // Predicated region
    $region6: #{hsic_pallas.1} parent=1 // pred_check
      _
    $region7: #{hsic_pallas.1} parent=1 // pred_check_branch
      %21 = sbr.rel (0) target = $region9
    $region8: #{hsic_pallas.1} parent=1 // pred_region
      %s23 = ssub.s32 128, 128
      %24 = vsyncadd [#allocation6], %s23
      %s26 = sshll.u32 [#allocation5], 4
      %s27 = int_to_ptr.vmem [resolvable:$true] %s26
      %29 = dma.hbm_to_vmem [thread:$0]  %s1, 128, %s27, [#allocation6]
    $region9: #{hsic_pallas.1} parent=1 // pred_fallthru
      _
    // Predicated region
    $region10: #{hsic_pallas.1} parent=1 // pred_check
      _
    $region11: #{hsic_pallas.1} parent=1 // pred_check_branch
      %31 = sbr.rel (0) target = $region13
    $region12: #{hsic_pallas.1} parent=1 // pred_region
      %32 = dma.done [#allocation3], 128
    $region13: #{hsic_pallas.1} parent=1 // pred_fallthru
      _
    // Predicated region
    $region14: #{hsic_pallas.1} parent=1 // pred_check
      _
    $region15: #{hsic_pallas.1} parent=1 // pred_check_branch
      %34 = sbr.rel (0) target = $region17
    $region16: #{hsic_pallas.1} parent=1 // pred_region
      %35 = dma.done [#allocation6], 128
    $region17: #{hsic_pallas.1} parent=1 // pred_fallthru
      _
    %v36 = vld [vmem:[#allocation2] sm:$0xff]
    %v37 = vld [vmem:[#allocation5] sm:$0xff]
    %vm38 = vcmask 261120
    %v40 = vsel %vm38, %v36, 0
    %42 = vmatprep.subr.mxu0 0.0
    %43 = vmatpush1.xpose.msra.mxu0 0.0
    %44 = vmatprep.subr.mxu0 0.0
    %45 = vmatpush1.xpose.msra.mxu0 0.0
    %46 = vmatprep.subr.mxu0 0.0
    %47 = vmatpush1.xpose.msra.mxu0 0.0
    %48 = vmatprep.subr.mxu0 0.0
    %49 = vmatpush1.xpose.msra.mxu0 0.0
    %50 = vmatprep.subr.mxu0 0.0
    %51 = vmatpush1.xpose.msra.mxu0 0.0
    %52 = vmatprep.subr.mxu0 0.0
    %53 = vmatpush1.xpose.msra.mxu0 0.0
    %54 = vmatprep.subr.mxu0 0.0
    %55 = vmatpush1.xpose.msra.mxu0 0.0
    %56 = vmatprep.subr.mxu0 0.0
    %57 = vmatpush1.xpose.msra.mxu0 0.0
    %58 = vmatprep.subr.mxu0 0.0
    %59 = vmatpush1.xpose.msra.mxu0 0.0
    %60 = vmatprep.subr.mxu0 0.0
    %61 = vmatpush1.xpose.msra.mxu0 0.0
    %62 = vmatprep.subr.mxu0 0.0
    %63 = vmatpush1.xpose.msra.mxu0 0.0
    %64 = vmatprep.subr.mxu0 0.0
    %65 = vmatpush1.xpose.msra.mxu0 0.0
    %66 = vmatprep.subr.mxu0 0.0
    %67 = vmatpush1.xpose.msra.mxu0 0.0
    %68 = vmatprep.subr.mxu0 0.0
    %69 = vmatpush1.xpose.msra.mxu0 0.0
    %70 = vmatprep.subr.mxu0 0.0
    %71 = vmatpush1.xpose.msra.mxu0 0.0
    %72 = vmatprep.subr.mxu0 0.0
    %73 = vmatpush1.xpose.msra.mxu0 %v40
    %74 = vmatprep.subr.mxu0 0.0
    %75 = vmatpush2.xpose.msra.mxu0 0.0
    %76 = vmatprep.subr.mxu0 0.0
    %77 = vmatpush2.xpose.msra.mxu0 0.0
    %78 = vmatprep.subr.mxu0 0.0
    %79 = vmatpush2.xpose.msra.mxu0 0.0
    %80 = vmatprep.subr.mxu0 0.0
    %81 = vmatpush2.xpose.msra.mxu0 0.0
    %82 = vmatprep.subr.mxu0 0.0
    %83 = vmatpush2.xpose.msra.mxu0 0.0
    %84 = vmatprep.subr.mxu0 0.0
    %85 = vmatpush2.xpose.msra.mxu0 0.0
    %86 = vmatprep.subr.mxu0 0.0
    %87 = vmatpush2.xpose.msra.mxu0 0.0
    %88 = vmatprep.subr.mxu0 0.0
    %89 = vmatpush2.xpose.msra.mxu0 0.0
    %90 = vmatprep.subr.mxu0 0.0
    %91 = vmatpush2.xpose.msra.mxu0 0.0
    %92 = vmatprep.subr.mxu0 0.0
    %93 = vmatpush2.xpose.msra.mxu0 0.0
    %94 = vmatprep.subr.mxu0 0.0
    %95 = vmatpush2.xpose.msra.mxu0 0.0
    %96 = vmatprep.subr.mxu0 0.0
    %97 = vmatpush2.xpose.msra.mxu0 0.0
    %98 = vmatprep.subr.mxu0 0.0
    %99 = vmatpush2.xpose.msra.mxu0 0.0
    %100 = vmatprep.subr.mxu0 0.0
    %101 = vmatpush2.xpose.msra.mxu0 0.0
    %102 = vmatprep.subr.mxu0 0.0
    %103 = vmatpush2.xpose.msra.mxu0 0.0
    %104 = vmatprep.subr.mxu0 0.0
    %105 = vmatpush2.xpose.msra.mxu0 0.0
    %106 = vmatprep.mubr.f32.mxu0 0.0
    %107 = vmatmul.mubr.f32.gmra.mxu0 %v40
    %v108 = vpop.f32.mrf.mxu0
    %v109 = vadd.f32 0.0, %v108
    %v110 = vpop.f32.mrf.mxu0
    %111 = vdwg.mxu0
    %v112 = vmul.f32 %v36, %v36
    %v113 = vsel %vm38, %v112, 0.0
    %114 = vadd.xlane.f32.xlu0 %v113
    %v115 = vpop.xlane.xlu0 %114
    %116 = vxpose.xlu0.b32.start [1/16] %v115, 128
    %117 = vxpose.xlu0.b32.cont [2/16] 0.0, 128
    %118 = vxpose.xlu0.b32.cont [3/16] 0.0, 128
    %119 = vxpose.xlu0.b32.cont [4/16] 0.0, 128
    %120 = vxpose.xlu0.b32.cont [5/16] 0.0, 128
    %121 = vxpose.xlu0.b32.cont [6/16] 0.0, 128
    %122 = vxpose.xlu0.b32.cont [7/16] 0.0, 128
    %123 = vxpose.xlu0.b32.cont [8/16] 0.0, 128
    %124 = vxpose.xlu0.b32.cont [9/16] 0.0, 128
    %125 = vxpose.xlu0.b32.cont [10/16] 0.0, 128
    %126 = vxpose.xlu0.b32.cont [11/16] 0.0, 128
    %127 = vxpose.xlu0.b32.cont [12/16] 0.0, 128
    %128 = vxpose.xlu0.b32.cont [13/16] 0.0, 128
    %129 = vxpose.xlu0.b32.cont [14/16] 0.0, 128
    %130 = vxpose.xlu0.b32.cont [15/16] 0.0, 128
    %131 = vxpose.xlu0.b32.end [16/16] 0.0, 128
    %v132 = vpop.trf.xlu0
    %v133 = vpop.trf.xlu0
    %v134 = vpop.trf.xlu0
    %v135 = vpop.trf.xlu0
    %v136 = vpop.trf.xlu0
    %v137 = vpop.trf.xlu0
    %v138 = vpop.trf.xlu0
    %v139 = vpop.trf.xlu0
    %v140 = vpop.trf.xlu0
    %v141 = vpop.trf.xlu0
    %v142 = vpop.trf.xlu0
    %v143 = vpop.trf.xlu0
    %v144 = vpop.trf.xlu0
    %v145 = vpop.trf.xlu0
    %v146 = vpop.trf.xlu0
    %v147 = vpop.trf.xlu0
    %v148 = vlaneseq
    %v149 = vshrl.u32 %v148, 7
    %v150 = vsub.s32 0, %v149
    %v151 = vrot.slane %v132, %v150
    %v152 = vadd.f32 %v115, %v151
    %v153 = vmul.f32 %v109, 2.0
    %v154 = vsub.f32 %v152, %v153
    %v155 = vmax.f32 %v154, 0.0
    %v156 = vsub.f32 0.0, %v155
    %v157 = vmul.f32 %v156, 0.5
    %v158 = vmul.f32 %v157, 1.442695
    %v159 = vpow.pop %v158
    %v161 = vsel %vm38, %v37, 0
    %163 = vmatprep.subr.mxu0 0.0
    %164 = vmatpush1.xpose.msra.mxu0 0.0
    %165 = vmatprep.subr.mxu0 0.0
    %166 = vmatpush1.xpose.msra.mxu0 0.0
    %167 = vmatprep.subr.mxu0 0.0
    %168 = vmatpush1.xpose.msra.mxu0 0.0
    %169 = vmatprep.subr.mxu0 0.0
    %170 = vmatpush1.xpose.msra.mxu0 0.0
    %171 = vmatprep.subr.mxu0 0.0
    %172 = vmatpush1.xpose.msra.mxu0 0.0
    %173 = vmatprep.subr.mxu0 0.0
    %174 = vmatpush1.xpose.msra.mxu0 0.0
    %175 = vmatprep.subr.mxu0 0.0
    %176 = vmatpush1.xpose.msra.mxu0 0.0
    %177 = vmatprep.subr.mxu0 0.0
    %178 = vmatpush1.xpose.msra.mxu0 0.0
    %179 = vmatprep.subr.mxu0 0.0
    %180 = vmatpush1.xpose.msra.mxu0 0.0
    %181 = vmatprep.subr.mxu0 0.0
    %182 = vmatpush1.xpose.msra.mxu0 0.0
    %183 = vmatprep.subr.mxu0 0.0
    %184 = vmatpush1.xpose.msra.mxu0 0.0
    %185 = vmatprep.subr.mxu0 0.0
    %186 = vmatpush1.xpose.msra.mxu0 0.0
    %187 = vmatprep.subr.mxu0 0.0
    %188 = vmatpush1.xpose.msra.mxu0 0.0
    %189 = vmatprep.subr.mxu0 0.0
    %190 = vmatpush1.xpose.msra.mxu0 0.0
    %191 = vmatprep.subr.mxu0 0.0
    %192 = vmatpush1.xpose.msra.mxu0 0.0
    %193 = vmatprep.subr.mxu0 0.0
    %194 = vmatpush1.xpose.msra.mxu0 %v161
    %195 = vmatprep.subr.mxu0 0.0
    %196 = vmatpush2.xpose.msra.mxu0 0.0
    %197 = vmatprep.subr.mxu0 0.0
    %198 = vmatpush2.xpose.msra.mxu0 0.0
    %199 = vmatprep.subr.mxu0 0.0
    %200 = vmatpush2.xpose.msra.mxu0 0.0
    %201 = vmatprep.subr.mxu0 0.0
    %202 = vmatpush2.xpose.msra.mxu0 0.0
    %203 = vmatprep.subr.mxu0 0.0
    %204 = vmatpush2.xpose.msra.mxu0 0.0
    %205 = vmatprep.subr.mxu0 0.0
    %206 = vmatpush2.xpose.msra.mxu0 0.0
    %207 = vmatprep.subr.mxu0 0.0
    %208 = vmatpush2.xpose.msra.mxu0 0.0
    %209 = vmatprep.subr.mxu0 0.0
    %210 = vmatpush2.xpose.msra.mxu0 0.0
    %211 = vmatprep.subr.mxu0 0.0
    %212 = vmatpush2.xpose.msra.mxu0 0.0
    %213 = vmatprep.subr.mxu0 0.0
    %214 = vmatpush2.xpose.msra.mxu0 0.0
    %215 = vmatprep.subr.mxu0 0.0
    %216 = vmatpush2.xpose.msra.mxu0 0.0
    %217 = vmatprep.subr.mxu0 0.0
    %218 = vmatpush2.xpose.msra.mxu0 0.0
    %219 = vmatprep.subr.mxu0 0.0
    %220 = vmatpush2.xpose.msra.mxu0 0.0
    %221 = vmatprep.subr.mxu0 0.0
    %222 = vmatpush2.xpose.msra.mxu0 0.0
    %223 = vmatprep.subr.mxu0 0.0
    %224 = vmatpush2.xpose.msra.mxu0 0.0
    %225 = vmatprep.subr.mxu0 0.0
    %226 = vmatpush2.xpose.msra.mxu0 0.0
    %227 = vmatprep.mubr.f32.mxu0 0.0
    %228 = vmatmul.mubr.f32.gmra.mxu0 %v161
    %v229 = vpop.f32.mrf.mxu0
    %v230 = vadd.f32 0.0, %v229
    %v231 = vpop.f32.mrf.mxu0
    %232 = vdwg.mxu0
    %v233 = vmul.f32 %v37, %v37
    %v234 = vsel %vm38, %v233, 0.0
    %235 = vadd.xlane.f32.xlu0 %v234
    %v236 = vpop.xlane.xlu0 %235
    %237 = vxpose.xlu0.b32.start [1/16] %v236, 128
    %238 = vxpose.xlu0.b32.cont [2/16] 0.0, 128
    %239 = vxpose.xlu0.b32.cont [3/16] 0.0, 128
    %240 = vxpose.xlu0.b32.cont [4/16] 0.0, 128
    %241 = vxpose.xlu0.b32.cont [5/16] 0.0, 128
    %242 = vxpose.xlu0.b32.cont [6/16] 0.0, 128
    %243 = vxpose.xlu0.b32.cont [7/16] 0.0, 128
    %244 = vxpose.xlu0.b32.cont [8/16] 0.0, 128
    %245 = vxpose.xlu0.b32.cont [9/16] 0.0, 128
    %246 = vxpose.xlu0.b32.cont [10/16] 0.0, 128
    %247 = vxpose.xlu0.b32.cont [11/16] 0.0, 128
    %248 = vxpose.xlu0.b32.cont [12/16] 0.0, 128
    %249 = vxpose.xlu0.b32.cont [13/16] 0.0, 128
    %250 = vxpose.xlu0.b32.cont [14/16] 0.0, 128
    %251 = vxpose.xlu0.b32.cont [15/16] 0.0, 128
    %252 = vxpose.xlu0.b32.end [16/16] 0.0, 128
    %v253 = vpop.trf.xlu0
    %v254 = vpop.trf.xlu0
    %v255 = vpop.trf.xlu0
    %v256 = vpop.trf.xlu0
    %v257 = vpop.trf.xlu0
    %v258 = vpop.trf.xlu0
    %v259 = vpop.trf.xlu0
    %v260 = vpop.trf.xlu0
    %v261 = vpop.trf.xlu0
    %v262 = vpop.trf.xlu0
    %v263 = vpop.trf.xlu0
    %v264 = vpop.trf.xlu0
    %v265 = vpop.trf.xlu0
    %v266 = vpop.trf.xlu0
    %v267 = vpop.trf.xlu0
    %v268 = vpop.trf.xlu0
    %v269 = vlaneseq
    %v270 = vshrl.u32 %v269, 7
    %v271 = vsub.s32 0, %v270
    %v272 = vrot.slane %v253, %v271
    %v273 = vadd.f32 %v236, %v272
    %v274 = vmul.f32 %v230, 2.0
    %v275 = vsub.f32 %v273, %v274
    %v276 = vmax.f32 %v275, 0.0
    %v277 = vsub.f32 0.0, %v276
    %v278 = vmul.f32 %v277, 0.5
    %v279 = vmul.f32 %v278, 1.442695
    %v280 = vpow.pop %v279
    %vm281 = vcmask 64512
    %v282 = vsel %vm281, %v159, 0.0
    %283 = vadd.xlane.f32.xlu0 %v282
    %v284 = vpop.xlane.xlu0 %283
    %v285 = vrcp.pop 8.0
    %v286 = vmul.f32 %v284, %v285
    %v287 = vrot.slane %v282, 4
    %v288 = vadd.f32 %v282, %v287
    %v289 = vrot.slane %v288, 2
    %v290 = vadd.f32 %v288, %v289
    %v291 = vrot.slane %v290, 1
    %v292 = vadd.f32 %v290, %v291
    %v293 = vmul.f32 %v292, %v285
    %v294 = vrot.slane %v284, 4
    %v295 = vadd.f32 %v284, %v294
    %v296 = vrot.slane %v295, 2
    %v297 = vadd.f32 %v295, %v296
    %v298 = vrot.slane %v297, 1
    %v299 = vadd.f32 %v297, %v298
    %s300 = vtos %v299
    %v301 = vrcp.pop 64.0
    %s302 = vtos %v301
    %s303 = smul.f32 %s300, %s302
    %v304 = vsub.f32 %v159, %v286
    %v305 = vsub.f32 %v304, %v293
    %v306 = vstv %s303
    %v307 = vadd.f32 %v305, %v306
    %v308 = vmul.f32 %v307, %v280
    %v309 = vsel %vm281, %v308, 0.0
    %310 = vadd.xlane.f32.xlu0 %v309
    %v311 = vpop.xlane.xlu0 %310
    %v312 = vrot.slane %v311, 4
    %v313 = vadd.f32 %v311, %v312
    %v314 = vrot.slane %v313, 2
    %v315 = vadd.f32 %v313, %v314
    %v316 = vrot.slane %v315, 1
    %v317 = vadd.f32 %v315, %v316
    %s318 = vtos %v317
    %v319 = vrcp.pop 49.0
    %s320 = vtos %v319
    %s321 = smul.f32 %s318, %s320
    %s322 = scalar_lea.smem [#allocation7], 0
    %323 = sst [smem:[%s322]] %s321
    // Predicated region
    $region18: #{hsic_pallas.1} parent=1 // pred_check
      _
    $region19: #{hsic_pallas.1} parent=1 // pred_check_branch
      %325 = sbr.rel (0) target = $region21
    $region20: #{hsic_pallas.1} parent=1 // pred_region
      %s327 = ssub.s32 16, 16
      %328 = vsyncadd [#allocation4], %s327
      %331 = dma.smem_to_hbm [#allocation7], 16, %s2, [#allocation4]
    $region21: #{hsic_pallas.1} parent=1 // pred_fallthru
      _
    // Predicated region
    $region22: #{hsic_pallas.1} parent=1 // pred_check
      _
    $region23: #{hsic_pallas.1} parent=1 // pred_check_branch
      %333 = sbr.rel (0) target = $region25
    $region24: #{hsic_pallas.1} parent=1 // pred_region
      %334 = dma.done [#allocation4], 16
    $region25: #{hsic_pallas.1} parent=1 // pred_fallthru
      _
    %335 = sfence
    %336 = vsyncpa [#allocation3], 1
    %337 = vsyncpa [#allocation6], 1
    %338 = vsyncpa [#allocation4], 1

</llo_original>
